<compile_context>
chip_gen: v6e
topology: v6e:2x2x1
jax: 0.10.0
libtpu: 0.0.40
codegen_flags: <defaults>
</compile_context>

<pallas_src>
import jax
import jax.numpy as jnp
from jax.experimental import pallas as pl
from jax.experimental.pallas import tpu as pltpu


# ----------------------------------------------------------------------------
# Pass 1: pooled statistics (row/column/global means -> gate factors and y3).
# ----------------------------------------------------------------------------
def _make_stats_kernel(H, W):
    inv_w = 1.0 / float(W)
    inv_h = 1.0 / float(H)
    inv_hw = 1.0 / float(H * W)
    f32 = jnp.float32

    def kernel(x_ref, y_ref, rmask_ref, cmask_ref,
               w2_ref, b2_ref, w1x_ref, w1y_ref, b1_ref,
               srow_ref, scol_ref, y3_ref,
               colacc, xacc, yacc):
        t = pl.program_id(1)
        nt = pl.num_programs(1)

        @pl.when(t == 0)
        def _():
            colacc[...] = jnp.zeros_like(colacc)
            xacc[...] = jnp.zeros_like(xacc)
            yacc[...] = jnp.zeros_like(yacc)

        x = x_ref[0]                                   # (Cin, T)
        y = y_ref[0]                                   # (Cp,  T)

        # x2 = conv1x1_2(x) without its bias (pooling and the 1x1 conv are both
        # linear, so the bias is added after pooling instead of per pixel).
        x2 = jnp.dot(w2_ref[...], x, preferred_element_type=f32)        # (1, T)

        # Per-row mean over W (rows are fully contained in this tile) -> x2_w.
        rowsum = jnp.sum(rmask_ref[...] * x2, axis=1, keepdims=True)    # (R, 1)
        srow_ref[0] = jax.nn.sigmoid(rowsum * inv_w + b2_ref[...])

        # Partial per-column sums (pool over H), accumulated across tiles.
        colacc[...] += jnp.sum(cmask_ref[...] * x2, axis=1, keepdims=True)  # (W, 1)

        # Partial global sums for the adaptive average pools.
        xacc[...] += jnp.sum(x.astype(f32), axis=1, keepdims=True)      # (Cin, 1)
        yacc[...] += jnp.sum(y.astype(f32), axis=1, keepdims=True)      # (Cp, 1)

        @pl.when(t == nt - 1)
        def _():
            # x2_h = sigmoid(mean over H of conv1x1_2(x))                (W, 1)
            scol_ref[0] = jax.nn.sigmoid(colacc[...] * inv_h + b2_ref[...])
            # y3 = sigmoid(conv1x1_1(cat(avgpool(x), avgpool(y))))     (Cin, 1)
            x3 = xacc[...] * inv_hw
            y2m = yacc[...] * inv_hw
            z = (jnp.dot(w1x_ref[...], x3, preferred_element_type=f32)
                 + jnp.dot(w1y_ref[...], y2m, preferred_element_type=f32)
                 + b1_ref[...])
            y3_ref[0] = jax.nn.sigmoid(z)

    return kernel


# ----------------------------------------------------------------------------
# Pass 2: y1 = conv1x1_3(y), per-pixel gate, channel scale y3, ReLU.
# ----------------------------------------------------------------------------
def _apply_kernel(y_ref, srow_ref, scol_ref, y3_ref, rmask_ref, cmask_ref,
                  w3_ref, b3_ref, o_ref):
    f32 = jnp.float32
    y = y_ref[0]                                                        # (Cp, T)
    # y1 = conv1x1_3(y): MXU matmul (bf16 x bf16 -> f32 accumulate when enabled).
    y1 = jnp.dot(w3_ref[...], y, preferred_element_type=f32) + b3_ref[...]  # (Cin, T)
    # Per-pixel gate: gate[l] = x2_w[row(l)] + x2_h[col(l)], broadcast into the
    # flat lane space via the tiny 0/1 masks (VPU multiply + sublane reduce).
    gate = (jnp.sum(rmask_ref[...] * srow_ref[0], axis=0, keepdims=True)
            + jnp.sum(cmask_ref[...] * scol_ref[0], axis=0, keepdims=True))  # (1, T)
    # relu(y3*(x2_h*y1 + x2_w*y1) + y1) == relu(y1 * (y3*gate + 1))
    scale = y3_ref[0] * gate + 1.0                                      # (Cin, T)
    o_ref[0] = jnp.maximum(y1 * scale, 0.0).astype(o_ref.dtype)


# ----------------------------------------------------------------------------
# Wrapper.
# ----------------------------------------------------------------------------
def _choose_row_tile(H, W, cmax, bytes_per_elem=4, target_bytes=2 << 20):
    """Rows per spatial tile R (T = R*W lanes).  Legal blocks need either
    R == H, or (R % 8 == 0 and H % R == 0 and (R*W) % 128 == 0)."""
    if H * W * cmax * bytes_per_elem <= target_bytes:
        return H
    valid = [r for r in range(8, H, 8) if H % r == 0 and (r * W) % 128 == 0]
    if not valid:
        return H
    fitting = [r for r in valid if r * W * cmax * bytes_per_elem <= target_bytes]
    return max(fitting) if fitting else min(valid)


def _vmem_limit(*block_bytes):
    # Double-buffered blocks + slack; never below the 32 MiB default.
    need = 2 * sum(int(b) for b in block_bytes) + (4 << 20)
    return int(min(128 << 20, max(32 << 20, need)))


def aeb_forward(x, y, params, *, matmul_dtype=jnp.bfloat16, row_tile=None):
    """AEB forward.  x: (N, inplanes, H, W), y: (N, planes, H, W), NCHW in/out.

    matmul_dtype: dtype of the conv1x1_3 matmul operands (y and its weight);
                  None keeps the input dtype.  Accumulation is always f32.
    row_tile:     image rows per spatial tile (None -> auto)."""
    N, Cin, H, W = x.shape
    Ny, Cp, H2, W2 = y.shape
    assert N == Ny
    if (H, W) != (H2, W2):
        # TODO(synk): bilinear (align_corners=True) interpolate + self.conv branch not implemented.
        raise NotImplementedError("AEB Pallas kernel only supports matching spatial sizes")
    HW = H * W
    f32 = jnp.float32

    R = _choose_row_tile(H, W, max(Cin, Cp)) if row_tile is None else int(row_tile)
    assert H % R == 0 and (R == H or (R % 8 == 0 and (R * W) % 128 == 0)), (R, H, W)
    nt = H // R
    T = R * W

    y_dt = y.dtype if matmul_dtype is None else matmul_dtype

    # NCHW -> (N, C, H*W): free reshapes; channels on sublanes, spatial on lanes.
    x2d = x.reshape(N, Cin, HW)
    y2d = y.reshape(N, Cp, HW).astype(y_dt)

    # 1x1-conv weights in (C_out, C_in) left-multiply form, biases as columns.
    w3 = params["w_conv1x1_3"].astype(y_dt)                  # (Cin, Cp)
    b3 = params["b_conv1x1_3"].reshape(Cin, 1).astype(f32)
    w2 = params["w_conv1x1_2"].reshape(1, Cin).astype(f32)
    b2 = params["b_conv1x1_2"].reshape(1, 1).astype(f32)
    w1 = params["w_conv1x1_1"].astype(f32)                   # (Cin, Cin + Cp)
    w1x = w1[:, :Cin]                                        # (Cin, Cin)
    w1y = w1[:, Cin:]                                        # (Cin, Cp)
    b1 = params["b_conv1x1_1"].reshape(Cin, 1).astype(f32)

    # Tiny per-tile 0/1 masks: rmask[r, l] selects the lanes of local image row
    # r inside a tile, cmask[w, l] selects the lanes of image column w.  They
    # replace the previous HWxH / HWxW dense matrices and are DMA'd once.
    lane = jnp.arange(T, dtype=jnp.int32)
    rmask = (lane[None, :] // W == jnp.arange(R, dtype=jnp.int32)[:, None]).astype(f32)
    cmask = (lane[None, :] % W == jnp.arange(W, dtype=jnp.int32)[:, None]).astype(f32)

    x_bytes = Cin * T * x2d.dtype.itemsize
    y_bytes = Cp * T * y2d.dtype.itemsize
    o_bytes = Cin * T * x.dtype.itemsize
    m_bytes = (R + W) * T * 4

    # ---- pass 1: pooled statistics ------------------------------------------
    srow, scol, y3v = pl.pallas_call(
        _make_stats_kernel(H, W),
        out_shape=(
            jax.ShapeDtypeStruct((N, H, 1), f32),     # sigmoid(mean_W x2) == x2_w
            jax.ShapeDtypeStruct((N, W, 1), f32),     # sigmoid(mean_H x2) == x2_h
            jax.ShapeDtypeStruct((N, Cin, 1), f32),   # y3
        ),
        grid=(N, nt),
        in_specs=[
            pl.BlockSpec((1, Cin, T), lambda n, t: (n, 0, t)),   # x tile
            pl.BlockSpec((1, Cp, T), lambda n, t: (n, 0, t)),    # y tile
            pl.BlockSpec((R, T), lambda n, t: (0, 0)),           # rmask
            pl.BlockSpec((W, T), lambda n, t: (0, 0)),           # cmask
            pl.BlockSpec((1, Cin), lambda n, t: (0, 0)),         # w2
            pl.BlockSpec((1, 1), lambda n, t: (0, 0)),           # b2
            pl.BlockSpec((Cin, Cin), lambda n, t: (0, 0)),       # w1x
            pl.BlockSpec((Cin, Cp), lambda n, t: (0, 0)),        # w1y
            pl.BlockSpec((Cin, 1), lambda n, t: (0, 0)),         # b1
        ],
        out_specs=(
            pl.BlockSpec((1, R, 1), lambda n, t: (n, t, 0)),
            pl.BlockSpec((1, W, 1), lambda n, t: (n, 0, 0)),
            pl.BlockSpec((1, Cin, 1), lambda n, t: (n, 0, 0)),
        ),
        scratch_shapes=[
            pltpu.VMEM((W, 1), f32),      # column-sum accumulator
            pltpu.VMEM((Cin, 1), f32),    # global x sum
            pltpu.VMEM((Cp, 1), f32),     # global y sum
        ],
        compiler_params=pltpu.CompilerParams(
            dimension_semantics=("parallel", "arbitrary"),
            vmem_limit_bytes=_vmem_limit(x_bytes, y_bytes, m_bytes),
        ),
    )(x2d, y2d, rmask, cmask, w2, b2, w1x, w1y, b1)

    # ---- pass 2: y1 matmul + gate + ReLU -------------------------------------
    out2d = pl.pallas_call(
        _apply_kernel,
        out_shape=jax.ShapeDtypeStruct((N, Cin, HW), x.dtype),
        grid=(N, nt),
        in_specs=[
            pl.BlockSpec((1, Cp, T), lambda n, t: (n, 0, t)),    # y tile
            pl.BlockSpec((1, R, 1), lambda n, t: (n, t, 0)),     # row gate factors
            pl.BlockSpec((1, W, 1), lambda n, t: (n, 0, 0)),     # column gate factors
            pl.BlockSpec((1, Cin, 1), lambda n, t: (n, 0, 0)),   # y3
            pl.BlockSpec((R, T), lambda n, t: (0, 0)),           # rmask
            pl.BlockSpec((W, T), lambda n, t: (0, 0)),           # cmask
            pl.BlockSpec((Cin, Cp), lambda n, t: (0, 0)),        # w3
            pl.BlockSpec((Cin, 1), lambda n, t: (0, 0)),         # b3
        ],
        out_specs=pl.BlockSpec((1, Cin, T), lambda n, t: (n, 0, t)),
        compiler_params=pltpu.CompilerParams(
            dimension_semantics=("parallel", "parallel"),
            vmem_limit_bytes=_vmem_limit(y_bytes, o_bytes, m_bytes),
        ),
    )(y2d, srow, scol, y3v, rmask, cmask, w3, b3)

    return out2d.reshape(N, Cin, H, W)


# ----------------------------------------------------------------------------
# Pure-JAX NCHW reference mirroring the PyTorch forward (same-size branch).
# ----------------------------------------------------------------------------
def aeb_reference(x, y, params):
    w3, b3 = params["w_conv1x1_3"], params["b_conv1x1_3"]
    w2, b2 = params["w_conv1x1_2"], params["b_conv1x1_2"]
    w1, b1 = params["w_conv1x1_1"], params["b_conv1x1_1"]
    y1 = jnp.einsum("oc,nchw->nohw", w3, y) + b3[None, :, None, None]
    x2 = jnp.einsum("oc,nchw->nohw", w2, x) + b2[None, :, None, None]   # (N,1,H,W)
    x2_h = jax.nn.sigmoid(jnp.mean(x2, axis=2, keepdims=True))          # (N,1,1,W)
    x2_w = jax.nn.sigmoid(jnp.mean(x2, axis=3, keepdims=True))          # (N,1,H,1)
    x3 = jnp.mean(x, axis=(2, 3))                                       # (N, Cin)
    y2 = jnp.mean(y, axis=(2, 3))                                       # (N, Cp)
    y3 = jax.nn.sigmoid(jnp.concatenate([x3, y2], axis=1) @ w1.T + b1)  # (N, Cin)
    y1_ = x2_h * y1 + x2_w * y1
    return jax.nn.relu(y3[:, :, None, None] * y1_ + y1)


def make_params(inplanes, planes, key):
    ks = jax.random.split(key, 6)
    s = 0.1
    return {
        "w_conv1x1_3": s * jax.random.normal(ks[0], (inplanes, planes), jnp.float32),
        "b_conv1x1_3": s * jax.random.normal(ks[1], (inplanes,), jnp.float32),
        "w_conv1x1_2": s * jax.random.normal(ks[2], (1, inplanes), jnp.float32),
        "b_conv1x1_2": s * jax.random.normal(ks[3], (1,), jnp.float32),
        "w_conv1x1_1": s * jax.random.normal(ks[4], (inplanes, inplanes + planes), jnp.float32),
        "b_conv1x1_1": s * jax.random.normal(ks[5], (inplanes,), jnp.float32),
    }


if __name__ == "__main__":
    N, inplanes, planes, H, W = 2, 8, 4, 16, 16
    key = jax.random.PRNGKey(0)
    kx, ky, kp = jax.random.split(key, 3)
    x = jax.random.normal(kx, (N, inplanes, H, W), jnp.float32)   # NCHW, like PyTorch
    y = jax.random.normal(ky, (N, planes, H, W), jnp.float32)
    params = make_params(inplanes, planes, kp)

    ref = aeb_reference(x, y, params)

    # Full-precision path, single spatial tile per grid step (auto R = H).
    out = jax.block_until_ready(aeb_forward(x, y, params, matmul_dtype=None))
    assert out.shape == (N, inplanes, H, W), out.shape
    assert jnp.allclose(out, ref, atol=1e-4, rtol=1e-4), float(jnp.max(jnp.abs(out - ref)))

    # Full-precision path, multi-tile spatial grid (exercises the accumulating
    # stats pass: two 8-row tiles -> grid (N, 2)).
    out_tiled = jax.block_until_ready(
        aeb_forward(x, y, params, matmul_dtype=None, row_tile=8))
    assert jnp.allclose(out_tiled, ref, atol=1e-4, rtol=1e-4), \
        float(jnp.max(jnp.abs(out_tiled - ref)))

    # Default path (bf16 matmul operands, f32 accumulation) -> loose tolerance.
    out_bf16 = jax.block_until_ready(aeb_forward(x, y, params))
    assert float(jnp.max(jnp.abs(out_bf16 - ref))) < 5e-2

    print("KERNEL_OK")
</pallas_src>

<mosaic_0001>
module attributes {stable_mosaic.version = 11 : i64} {
  func.func @kernel(%arg0: i32, %arg1: i32, %arg2: memref<1x8x256xf32, #tpu.memory_space<vmem>>, %arg3: memref<1x4x256xf32, #tpu.memory_space<vmem>>, %arg4: memref<16x256xf32, #tpu.memory_space<vmem>>, %arg5: memref<16x256xf32, #tpu.memory_space<vmem>>, %arg6: memref<1x8xf32, #tpu.memory_space<vmem>>, %arg7: memref<1x1xf32, #tpu.memory_space<vmem>>, %arg8: memref<8x8xf32, #tpu.memory_space<vmem>>, %arg9: memref<8x4xf32, #tpu.memory_space<vmem>>, %arg10: memref<8x1xf32, #tpu.memory_space<vmem>>, %arg11: memref<1x16x1xf32, #tpu.memory_space<vmem>>, %arg12: memref<1x16x1xf32, #tpu.memory_space<vmem>>, %arg13: memref<1x8x1xf32, #tpu.memory_space<vmem>>, %arg14: memref<16x1xf32, #tpu.memory_space<vmem>>, %arg15: memref<8x1xf32, #tpu.memory_space<vmem>>, %arg16: memref<4x1xf32, #tpu.memory_space<vmem>>) attributes {dimension_semantics = [#tpu.dimension_semantics<parallel>, #tpu.dimension_semantics<arbitrary>], iteration_bounds = array<i64: 2, 1>, scalar_prefetch = 0 : i64, scratch_operands = 3 : i64, tpu.core_type = #tpu.core_type<tc>, window_params = [{transform_indices = @transform_0, window_bounds = array<i64: 1, 8, 256>}, {transform_indices = @transform_1, window_bounds = array<i64: 1, 4, 256>}, {pipeline_mode = #tpu.pipeline_mode<synchronous>, transform_indices = @transform_2, window_bounds = array<i64: 16, 256>}, {pipeline_mode = #tpu.pipeline_mode<synchronous>, transform_indices = @transform_3, window_bounds = array<i64: 16, 256>}, {pipeline_mode = #tpu.pipeline_mode<synchronous>, transform_indices = @transform_4, window_bounds = array<i64: 1, 8>}, {pipeline_mode = #tpu.pipeline_mode<synchronous>, transform_indices = @transform_5, window_bounds = array<i64: 1, 1>}, {pipeline_mode = #tpu.pipeline_mode<synchronous>, transform_indices = @transform_6, window_bounds = array<i64: 8, 8>}, {pipeline_mode = #tpu.pipeline_mode<synchronous>, transform_indices = @transform_7, window_bounds = array<i64: 8, 4>}, {pipeline_mode = #tpu.pipeline_mode<synchronous>, transform_indices = @transform_8, window_bounds = array<i64: 8, 1>}, {transform_indices = @transform_9, window_bounds = array<i64: 1, 16, 1>}, {transform_indices = @transform_10, window_bounds = array<i64: 1, 16, 1>}, {transform_indices = @transform_11, window_bounds = array<i64: 1, 8, 1>}]} {
    %c0_i32 = arith.constant 0 : i32
    %0 = arith.cmpi eq, %arg1, %c0_i32 : i32
    %1 = arith.extui %0 : i1 to i32
    %c0_i32_0 = arith.constant 0 : i32
    %2 = arith.cmpi ne, %1, %c0_i32_0 : i32
    scf.if %2 {
      %cst_37 = arith.constant 0.000000e+00 : f32
      %48 = vector.broadcast %cst_37 : f32 to vector<16x1xf32>
      %c0_38 = arith.constant 0 : index
      %c0_39 = arith.constant 0 : index
      %49 = vector.load %arg14[%c0_38, %c0_39] : memref<16x1xf32, #tpu.memory_space<vmem>>, vector<16x1xf32>
      tpu.vector_store %arg14[%c0_38, %c0_39], %48 {strides = array<i32>} : memref<16x1xf32, #tpu.memory_space<vmem>>, vector<16x1xf32>,
      %cst_40 = arith.constant 0.000000e+00 : f32
      %50 = vector.broadcast %cst_40 : f32 to vector<8x1xf32>
      %c0_41 = arith.constant 0 : index
      %c0_42 = arith.constant 0 : index
      %51 = vector.load %arg15[%c0_41, %c0_42] : memref<8x1xf32, #tpu.memory_space<vmem>>, vector<8x1xf32>
      tpu.vector_store %arg15[%c0_41, %c0_42], %50 {strides = array<i32>} : memref<8x1xf32, #tpu.memory_space<vmem>>, vector<8x1xf32>,
      %cst_43 = arith.constant 0.000000e+00 : f32
      %52 = vector.broadcast %cst_43 : f32 to vector<4x1xf32>
      %c0_44 = arith.constant 0 : index
      %c0_45 = arith.constant 0 : index
      %53 = vector.load %arg16[%c0_44, %c0_45] : memref<4x1xf32, #tpu.memory_space<vmem>>, vector<4x1xf32>
      tpu.vector_store %arg16[%c0_44, %c0_45], %52 {strides = array<i32>} : memref<4x1xf32, #tpu.memory_space<vmem>>, vector<4x1xf32>,
    } else {
    }
    %c0 = arith.constant 0 : index
    %c0_1 = arith.constant 0 : index
    %c0_2 = arith.constant 0 : index
    %3 = vector.load %arg2[%c0, %c0_1, %c0_2] : memref<1x8x256xf32, #tpu.memory_space<vmem>>, vector<1x8x256xf32>
    %4 = vector.shape_cast %3 : vector<1x8x256xf32> to vector<8x256xf32>
    %c0_3 = arith.constant 0 : index
    %c0_4 = arith.constant 0 : index
    %c0_5 = arith.constant 0 : index
    %5 = vector.load %arg3[%c0_3, %c0_4, %c0_5] : memref<1x4x256xf32, #tpu.memory_space<vmem>>, vector<1x4x256xf32>
    %6 = vector.shape_cast %5 : vector<1x4x256xf32> to vector<4x256xf32>
    %c0_6 = arith.constant 0 : index
    %c0_7 = arith.constant 0 : index
    %7 = vector.load %arg6[%c0_6, %c0_7] : memref<1x8xf32, #tpu.memory_space<vmem>>, vector<1x8xf32>
    %cst = arith.constant dense<0.000000e+00> : vector<1x256xf32>
    %8 = tpu.matmul %7, %4, %cst {dimension_numbers = #tpu.dot_dimension_numbers<[1], [0], [0], [1], [0, 0, 1, 1], [], []>} : vector<1x8xf32>, vector<8x256xf32>, vector<1x256xf32> -> vector<1x256xf32>
    %c0_8 = arith.constant 0 : index
    %c0_9 = arith.constant 0 : index
    %9 = vector.load %arg4[%c0_8, %c0_9] : memref<16x256xf32, #tpu.memory_space<vmem>>, vector<16x256xf32>
    %10 = vector.broadcast %8 : vector<1x256xf32> to vector<16x256xf32>
    %11 = arith.mulf %9, %10 : vector<16x256xf32>
    %cst_10 = arith.constant dense<0.000000e+00> : vector<16xf32>
    %12 = vector.multi_reduction <add>, %11, %cst_10 [1] : vector<16x256xf32> to vector<16xf32>
    %13 = vector.shape_cast %12 : vector<16xf32> to vector<16x1xf32>
    %cst_11 = arith.constant 6.250000e-02 : f32
    %14 = vector.broadcast %cst_11 : f32 to vector<16x1xf32>
    %15 = arith.mulf %13, %14 : vector<16x1xf32>
    %c0_12 = arith.constant 0 : index
    %c0_13 = arith.constant 0 : index
    %16 = vector.load %arg7[%c0_12, %c0_13] : memref<1x1xf32, #tpu.memory_space<vmem>>, vector<1x1xf32>
    %17 = vector.broadcast %16 : vector<1x1xf32> to vector<16x1xf32>
    %18 = arith.addf %15, %17 : vector<16x1xf32>
    %19 = arith.negf %18 : vector<16x1xf32>
    %20 = math.exp %19 : vector<16x1xf32>
    %cst_14 = arith.constant 1.000000e+00 : f32
    %21 = vector.broadcast %cst_14 : f32 to vector<16x1xf32>
    %22 = arith.addf %21, %20 : vector<16x1xf32>
    %23 = arith.divf %21, %22 : vector<16x1xf32>
    %c0_15 = arith.constant 0 : index
    %c0_16 = arith.constant 0 : index
    %c0_17 = arith.constant 0 : index
    %24 = vector.load %arg11[%c0_15, %c0_16, %c0_17] : memref<1x16x1xf32, #tpu.memory_space<vmem>>, vector<1x16x1xf32>
    %25 = vector.shape_cast %24 : vector<1x16x1xf32> to vector<16x1xf32>
    %26 = vector.shape_cast %23 : vector<16x1xf32> to vector<1x16x1xf32>
    tpu.vector_store %arg11[%c0_15, %c0_16, %c0_17], %26 {strides = array<i32>} : memref<1x16x1xf32, #tpu.memory_space<vmem>>, vector<1x16x1xf32>,
    %c0_18 = arith.constant 0 : index
    %c0_19 = arith.constant 0 : index
    %27 = vector.load %arg14[%c0_18, %c0_19] : memref<16x1xf32, #tpu.memory_space<vmem>>, vector<16x1xf32>
    %c0_20 = arith.constant 0 : index
    %c0_21 = arith.constant 0 : index
    %28 = vector.load %arg5[%c0_20, %c0_21] : memref<16x256xf32, #tpu.memory_space<vmem>>, vector<16x256xf32>
    %29 = vector.broadcast %8 : vector<1x256xf32> to vector<16x256xf32>
    %30 = arith.mulf %28, %29 : vector<16x256xf32>
    %cst_22 = arith.constant dense<0.000000e+00> : vector<16xf32>
    %31 = vector.multi_reduction <add>, %30, %cst_22 [1] : vector<16x256xf32> to vector<16xf32>
    %32 = vector.shape_cast %31 : vector<16xf32> to vector<16x1xf32>
    %33 = arith.addf %27, %32 : vector<16x1xf32>
    %c0_23 = arith.constant 0 : index
    %c0_24 = arith.constant 0 : index
    %34 = vector.load %arg14[%c0_23, %c0_24] : memref<16x1xf32, #tpu.memory_space<vmem>>, vector<16x1xf32>
    tpu.vector_store %arg14[%c0_23, %c0_24], %33 {strides = array<i32>} : memref<16x1xf32, #tpu.memory_space<vmem>>, vector<16x1xf32>,
    %c0_25 = arith.constant 0 : index
    %c0_26 = arith.constant 0 : index
    %35 = vector.load %arg15[%c0_25, %c0_26] : memref<8x1xf32, #tpu.memory_space<vmem>>, vector<8x1xf32>
    %cst_27 = arith.constant dense<0.000000e+00> : vector<8xf32>
    %36 = vector.multi_reduction <add>, %4, %cst_27 [1] : vector<8x256xf32> to vector<8xf32>
    %37 = vector.shape_cast %36 : vector<8xf32> to vector<8x1xf32>
    %38 = arith.addf %35, %37 : vector<8x1xf32>
    %c0_28 = arith.constant 0 : index
    %c0_29 = arith.constant 0 : index
    %39 = vector.load %arg15[%c0_28, %c0_29] : memref<8x1xf32, #tpu.memory_space<vmem>>, vector<8x1xf32>
    tpu.vector_store %arg15[%c0_28, %c0_29], %38 {strides = array<i32>} : memref<8x1xf32, #tpu.memory_space<vmem>>, vector<8x1xf32>,
    %c0_30 = arith.constant 0 : index
    %c0_31 = arith.constant 0 : index
    %40 = vector.load %arg16[%c0_30, %c0_31] : memref<4x1xf32, #tpu.memory_space<vmem>>, vector<4x1xf32>
    %cst_32 = arith.constant dense<0.000000e+00> : vector<4xf32>
    %41 = vector.multi_reduction <add>, %6, %cst_32 [1] : vector<4x256xf32> to vector<4xf32>
    %42 = vector.shape_cast %41 : vector<4xf32> to vector<4x1xf32>
    %43 = arith.addf %40, %42 : vector<4x1xf32>
    %c0_33 = arith.constant 0 : index
    %c0_34 = arith.constant 0 : index
    %44 = vector.load %arg16[%c0_33, %c0_34] : memref<4x1xf32, #tpu.memory_space<vmem>>, vector<4x1xf32>
    tpu.vector_store %arg16[%c0_33, %c0_34], %43 {strides = array<i32>} : memref<4x1xf32, #tpu.memory_space<vmem>>, vector<4x1xf32>,
    %c0_i32_35 = arith.constant 0 : i32
    %45 = arith.cmpi eq, %arg1, %c0_i32_35 : i32
    %46 = arith.extui %45 : i1 to i32
    %c0_i32_36 = arith.constant 0 : i32
    %47 = arith.cmpi ne, %46, %c0_i32_36 : i32
    scf.if %47 {
      %c0_37 = arith.constant 0 : index
      %c0_38 = arith.constant 0 : index
      %48 = vector.load %arg14[%c0_37, %c0_38] : memref<16x1xf32, #tpu.memory_space<vmem>>, vector<16x1xf32>
      %cst_39 = arith.constant 6.250000e-02 : f32
      %49 = vector.broadcast %cst_39 : f32 to vector<16x1xf32>
      %50 = arith.mulf %48, %49 : vector<16x1xf32>
      %c0_40 = arith.constant 0 : index
      %c0_41 = arith.constant 0 : index
      %51 = vector.load %arg7[%c0_40, %c0_41] : memref<1x1xf32, #tpu.memory_space<vmem>>, vector<1x1xf32>
      %52 = vector.broadcast %51 : vector<1x1xf32> to vector<16x1xf32>
      %53 = arith.addf %50, %52 : vector<16x1xf32>
      %54 = arith.negf %53 : vector<16x1xf32>
      %55 = math.exp %54 : vector<16x1xf32>
      %cst_42 = arith.constant 1.000000e+00 : f32
      %56 = vector.broadcast %cst_42 : f32 to vector<16x1xf32>
      %57 = arith.addf %56, %55 : vector<16x1xf32>
      %58 = arith.divf %56, %57 : vector<16x1xf32>
      %c0_43 = arith.constant 0 : index
      %c0_44 = arith.constant 0 : index
      %c0_45 = arith.constant 0 : index
      %59 = vector.load %arg12[%c0_43, %c0_44, %c0_45] : memref<1x16x1xf32, #tpu.memory_space<vmem>>, vector<1x16x1xf32>
      %60 = vector.shape_cast %59 : vector<1x16x1xf32> to vector<16x1xf32>
      %61 = vector.shape_cast %58 : vector<16x1xf32> to vector<1x16x1xf32>
      tpu.vector_store %arg12[%c0_43, %c0_44, %c0_45], %61 {strides = array<i32>} : memref<1x16x1xf32, #tpu.memory_space<vmem>>, vector<1x16x1xf32>,
      %c0_46 = arith.constant 0 : index
      %c0_47 = arith.constant 0 : index
      %62 = vector.load %arg15[%c0_46, %c0_47] : memref<8x1xf32, #tpu.memory_space<vmem>>, vector<8x1xf32>
      %cst_48 = arith.constant 3.906250e-03 : f32
      %63 = vector.broadcast %cst_48 : f32 to vector<8x1xf32>
      %64 = arith.mulf %62, %63 : vector<8x1xf32>
      %c0_49 = arith.constant 0 : index
      %c0_50 = arith.constant 0 : index
      %65 = vector.load %arg16[%c0_49, %c0_50] : memref<4x1xf32, #tpu.memory_space<vmem>>, vector<4x1xf32>
      %cst_51 = arith.constant 3.906250e-03 : f32
      %66 = vector.broadcast %cst_51 : f32 to vector<4x1xf32>
      %67 = arith.mulf %65, %66 : vector<4x1xf32>
      %c0_52 = arith.constant 0 : index
      %c0_53 = arith.constant 0 : index
      %68 = vector.load %arg8[%c0_52, %c0_53] : memref<8x8xf32, #tpu.memory_space<vmem>>, vector<8x8xf32>
      %cst_54 = arith.constant dense<0.000000e+00> : vector<8x1xf32>
      %69 = tpu.matmul %68, %64, %cst_54 {dimension_numbers = #tpu.dot_dimension_numbers<[1], [0], [0], [1], [0, 0, 1, 1], [], []>} : vector<8x8xf32>, vector<8x1xf32>, vector<8x1xf32> -> vector<8x1xf32>
      %c0_55 = arith.constant 0 : index
      %c0_56 = arith.constant 0 : index
      %70 = vector.load %arg9[%c0_55, %c0_56] : memref<8x4xf32, #tpu.memory_space<vmem>>, vector<8x4xf32>
      %cst_57 = arith.constant dense<0.000000e+00> : vector<8x1xf32>
      %71 = tpu.matmul %70, %67, %cst_57 {dimension_numbers = #tpu.dot_dimension_numbers<[1], [0], [0], [1], [0, 0, 1, 1], [], []>} : vector<8x4xf32>, vector<4x1xf32>, vector<8x1xf32> -> vector<8x1xf32>
      %72 = arith.addf %69, %71 : vector<8x1xf32>
      %c0_58 = arith.constant 0 : index
      %c0_59 = arith.constant 0 : index
      %73 = vector.load %arg10[%c0_58, %c0_59] : memref<8x1xf32, #tpu.memory_space<vmem>>, vector<8x1xf32>
      %74 = arith.addf %72, %73 : vector<8x1xf32>
      %75 = arith.negf %74 : vector<8x1xf32>
      %76 = math.exp %75 : vector<8x1xf32>
      %cst_60 = arith.constant 1.000000e+00 : f32
      %77 = vector.broadcast %cst_60 : f32 to vector<8x1xf32>
      %78 = arith.addf %77, %76 : vector<8x1xf32>
      %79 = arith.divf %77, %78 : vector<8x1xf32>
      %c0_61 = arith.constant 0 : index
      %c0_62 = arith.constant 0 : index
      %c0_63 = arith.constant 0 : index
      %80 = vector.load %arg13[%c0_61, %c0_62, %c0_63] : memref<1x8x1xf32, #tpu.memory_space<vmem>>, vector<1x8x1xf32>
      %81 = vector.shape_cast %80 : vector<1x8x1xf32> to vector<8x1xf32>
      %82 = vector.shape_cast %79 : vector<8x1xf32> to vector<1x8x1xf32>
      tpu.vector_store %arg13[%c0_61, %c0_62, %c0_63], %82 {strides = array<i32>} : memref<1x8x1xf32, #tpu.memory_space<vmem>>, vector<1x8x1xf32>,
    } else {
    }
    return
  }
  func.func @transform_0(%arg0: i32, %arg1: i32) -> (i32, i32, i32) {
    %c0_i32 = arith.constant 0 : i32
    %c0_i32_0 = arith.constant 0 : i32
    return %arg0, %c0_i32, %arg1 : i32, i32, i32
  }
  func.func @transform_1(%arg0: i32, %arg1: i32) -> (i32, i32, i32) {
    %c0_i32 = arith.constant 0 : i32
    %c0_i32_0 = arith.constant 0 : i32
    return %arg0, %c0_i32, %arg1 : i32, i32, i32
  }
  func.func @transform_2(%arg0: i32, %arg1: i32) -> (i32, i32) {
    %c0_i32 = arith.constant 0 : i32
    %c0_i32_0 = arith.constant 0 : i32
    %c0_i32_1 = arith.constant 0 : i32
    return %c0_i32, %c0_i32_0 : i32, i32
  }
  func.func @transform_3(%arg0: i32, %arg1: i32) -> (i32, i32) {
    %c0_i32 = arith.constant 0 : i32
    %c0_i32_0 = arith.constant 0 : i32
    %c0_i32_1 = arith.constant 0 : i32
    return %c0_i32, %c0_i32_0 : i32, i32
  }
  func.func @transform_4(%arg0: i32, %arg1: i32) -> (i32, i32) {
    %c0_i32 = arith.constant 0 : i32
    %c0_i32_0 = arith.constant 0 : i32
    %c0_i32_1 = arith.constant 0 : i32
    return %c0_i32, %c0_i32_0 : i32, i32
  }
  func.func @transform_5(%arg0: i32, %arg1: i32) -> (i32, i32) {
    %c0_i32 = arith.constant 0 : i32
    %c0_i32_0 = arith.constant 0 : i32
    %c0_i32_1 = arith.constant 0 : i32
    return %c0_i32, %c0_i32_0 : i32, i32
  }
  func.func @transform_6(%arg0: i32, %arg1: i32) -> (i32, i32) {
    %c0_i32 = arith.constant 0 : i32
    %c0_i32_0 = arith.constant 0 : i32
    %c0_i32_1 = arith.constant 0 : i32
    return %c0_i32, %c0_i32_0 : i32, i32
  }
  func.func @transform_7(%arg0: i32, %arg1: i32) -> (i32, i32) {
    %c0_i32 = arith.constant 0 : i32
    %c0_i32_0 = arith.constant 0 : i32
    %c0_i32_1 = arith.constant 0 : i32
    return %c0_i32, %c0_i32_0 : i32, i32
  }
  func.func @transform_8(%arg0: i32, %arg1: i32) -> (i32, i32) {
    %c0_i32 = arith.constant 0 : i32
    %c0_i32_0 = arith.constant 0 : i32
    %c0_i32_1 = arith.constant 0 : i32
    return %c0_i32, %c0_i32_0 : i32, i32
  }
  func.func @transform_9(%arg0: i32, %arg1: i32) -> (i32, i32, i32) {
    %c0_i32 = arith.constant 0 : i32
    %c0_i32_0 = arith.constant 0 : i32
    return %arg0, %arg1, %c0_i32 : i32, i32, i32
  }
  func.func @transform_10(%arg0: i32, %arg1: i32) -> (i32, i32, i32) {
    %c0_i32 = arith.constant 0 : i32
    %c0_i32_0 = arith.constant 0 : i32
    %c0_i32_1 = arith.constant 0 : i32
    return %arg0, %c0_i32, %c0_i32_0 : i32, i32, i32
  }
  func.func @transform_11(%arg0: i32, %arg1: i32) -> (i32, i32, i32) {
    %c0_i32 = arith.constant 0 : i32
    %c0_i32_0 = arith.constant 0 : i32
    %c0_i32_1 = arith.constant 0 : i32
    return %arg0, %c0_i32, %c0_i32_0 : i32, i32, i32
  }
}

</mosaic_0001>

<llo_original>
// kernel: tpu_custom_call.1
$region0: #{tpu_custom_call.1}
  #allocation0 [shape = 'u32[]', space=smem, size = 0x4, offset = 0x4, fixed_abs, tag = 'smem constant byte address 0x4 - core index']
  #allocation1 [shape = 'u32[144,128]{1,0:T(1,128)}', space=vmem, size = 0x12000, scoped, tag = 'internal scratch']
  #allocation2 [shape = 'f32[16,1]{1,0:T(8,128)}', space=vmem, size = 0x2000, scoped, tag = 'scratch operand']
  #allocation3 [shape = 'f32[8,1]{1,0:T(8,128)}', space=vmem, size = 0x1000, scoped, tag = 'scratch operand']
  #allocation4 [shape = 'f32[4,1]{1,0:T(4,128)}', space=vmem, size = 0x800, scoped, tag = 'scratch operand']
  #allocation5 [shape = 'f32[1,1]{1,0:T(1,128)S(1)}', space=vmem, size = 0x200, scoped, tag = 'scoped memory for tpu_custom_call.1']
  %s0 = inlined_call_operand.hbm [shape: f32[2,8,256], index: 0, kind: input, shape index: {}]
  %s1 = inlined_call_operand.vmem [shape: f32[2,4,256], index: 1, kind: input, shape index: {}]
  %s2 = inlined_call_operand.hbm [shape: f32[16,256], index: 2, kind: input, shape index: {}]
  %s3 = inlined_call_operand.hbm [shape: f32[16,256], index: 3, kind: input, shape index: {}]
  %s4 = inlined_call_operand.vmem [shape: f32[1,8], index: 4, kind: input, shape index: {}]
  %s5 = inlined_call_operand.<no memory space> [shape: f32[1,1], index: 5, kind: input, shape index: {}]
  %s6 = inlined_call_operand.vmem [shape: f32[8,8], index: 6, kind: input, shape index: {}]
  %s7 = inlined_call_operand.vmem [shape: f32[8,4], index: 7, kind: input, shape index: {}]
  %s8 = inlined_call_operand.vmem [shape: f32[8,1], index: 8, kind: input, shape index: {}]
  %s9 = inlined_call_operand.vmem [shape: f32[2,16,1], index: 9, kind: output, shape index: {0}]
  %s10 = inlined_call_operand.vmem [shape: f32[2,16,1], index: 10, kind: output, shape index: {1}]
  %s11 = inlined_call_operand.vmem [shape: f32[2,8,1], index: 11, kind: output, shape index: {2}]
  %12 = xla_tuple %s9, %s10, %s11
  %s13 = sld [smem:[#allocation0]]
  $region105: #{tpu_custom_call.1} parent=0
    _
  %s15 = ssub.s32 1, %s13
  %s16 = scalar_select 0, %s15, %s13
  %v17 = vstv %s5
  %18 = vst [vmem:[#allocation5] sm:$0x1] %v17
  $region1: #{tpu_custom_call.1} parent=0
    #allocation6 [shape = 'u8[16384]{0}', space=vmem, size = 0x4000, scoped, tag = 'input window, operand 0']
    #allocation7 [shape = 's32[2]{0}', space=sflag, size = 0x8, scoped, tag = 'scoped memory for tpu_custom_call.1']
    #allocation8 [shape = 'u8[16384]{0}', space=vmem, size = 0x4000, scoped, tag = 'input window, operand 2, single buffered']
    #allocation9 [shape = 's32[1]{0}', space=sflag, size = 0x4, scoped, tag = 'scoped memory for tpu_custom_call.1']
    #allocation10 [shape = 'u8[16384]{0}', space=vmem, size = 0x4000, scoped, tag = 'input window, operand 3, single buffered']
    %19 = vsyncpa [#allocation7], 0
    %s20 = scalar_lea.sflag [#allocation7], 1
    %21 = vsyncpa %s20, 0
    %22 = vsyncpa [#allocation9], 0
    loop: start=0, step=1, limit=4
    $region2: #{tpu_custom_call.1} parent=1 // loop_pre_header
      _
    $region3: #{tpu_custom_call.1} parent=1 // loop_header
      %s24 = sphi 0, %s28
      %p25 = scmp.ge.s32.totalorder %s24, 4
      %s31 = sphi 0, %s43
      %s32 = sphi 0, %s39
      %s33 = sphi 0, %s31
      %s34 = sphi 0, %s32
      %s35 = sphi 0, %s33
      %s36 = sphi 0, %s34
      %s48 = sphi 0, %s50
      %s51 = sphi 0, %s48
      %s52 = sphi 0, %s51
      %s68 = sphi 0, %s52
      %s76 = sphi 0, %s78
      %s79 = sphi 0, %s76
      %s80 = sphi 0, %s79
      %s96 = sphi 0, %s80
      %s100 = sphi 0, %s100
      %s102 = sphi 0, %s100
      %s103 = sphi 0, %s102
      %s117 = sphi 0, %s103
      %s121 = sphi 0, %s121
      %s123 = sphi 0, %s121
      %s124 = sphi 0, %s123
      %s138 = sphi 0, %s124
      %s142 = sphi 0, %s142
      %s144 = sphi 0, %s142
      %s145 = sphi 0, %s144
      %s159 = sphi 0, %s145
      %s163 = sphi 0, %s163
      %s165 = sphi 0, %s163
      %s166 = sphi 0, %s165
      %s180 = sphi 0, %s166
      %s184 = sphi 0, %s184
      %s186 = sphi 0, %s184
      %s187 = sphi 0, %s186
      %s201 = sphi 0, %s187
      %s205 = sphi 0, %s205
      %s207 = sphi 0, %s205
      %s208 = sphi 0, %s207
      %s222 = sphi 0, %s208
      %s226 = sphi 0, %s226
      %s228 = sphi 0, %s226
      %s229 = sphi 0, %s228
      %s243 = sphi 0, %s229
      %s251 = sphi 0, %s253
      %s254 = sphi 0, %s251
      %s255 = sphi 0, %s254
      %s271 = sphi 0, %s255
      %s277 = sphi 0, %s279
      %s280 = sphi 0, %s277
      %s281 = sphi 0, %s280
      %s297 = sphi 0, %s281
      %s303 = sphi 0, %s305
      %s306 = sphi 0, %s303
      %s307 = sphi 0, %s306
      %s323 = sphi 0, %s307
    $region4: #{tpu_custom_call.1} parent=1 // loop_header_branch
      %27 = sbr.rel (%p25) target = $region8
    $region5: #{tpu_custom_call.1} parent=1 // loop_body
      %s29 = ssub.s32 %s24, 1
      %s30 = ssub.s32 %s24, 2
      %s37 = sadd.s32 1, %s32
      %p38 = scmp.ge.s32.totalorder %s37, 1
      %s39 = scalar_select %p38, 0, %s37
      %s40 = sadd.s32 1, %s31
      %s41 = scalar_select %p38, %s40, %s31
      %p42 = scmp.ge.s32.totalorder %s41, 2
      %s43 = scalar_select %p42, 0, %s41
      %s44 = ssub.s32 %s31, %s43
      %s45 = ssub.s32 %s32, %s39
      %s46 = sor.u32 %s44, %s45
      %p47 = scmp.eq.s32.totalorder %s46, 0
      %s49 = sadd.s32 %s48, 1
      %s50 = scalar_select %p47, %s48, %s49
      %p53 = pneg %p47
      %p54 = scmp.eq.s32.totalorder %s24, 1
      %p55 = por %p53, %p54
      %p56 = scmp.ne.s32.totalorder %s48, %s51
      %p57 = scmp.eq.s32.totalorder %s24, 0
      %p58 = por %p56, %p57
      %p59 = scmp.ne.s32.totalorder %s48, %s51
      %p60 = scmp.eq.s32.totalorder %s29, 1
      %p61 = por %p59, %p60
      %p62 = scmp.ne.s32.totalorder %s51, %s52
      %p63 = scmp.eq.s32.totalorder %s29, 0
      %p64 = por %p62, %p63
      %p65 = scmp.ne.s32.totalorder %s51, %s52
      %p66 = scmp.eq.s32.totalorder %s30, 1
      %p67 = por %p65, %p66
      %p69 = scmp.ne.s32.totalorder %s52, %s68
      %p70 = scmp.eq.s32.totalorder %s30, 0
      %p71 = por %p69, %p70
      %s72 = ssub.s32 %s31, %s43
      %s73 = ssub.s32 %s32, %s39
      %s74 = sor.u32 %s72, %s73
      %p75 = scmp.eq.s32.totalorder %s74, 0
      %s77 = sadd.s32 %s76, 1
      %s78 = scalar_select %p75, %s76, %s77
      %p81 = pneg %p75
      %p82 = scmp.eq.s32.totalorder %s24, 1
      %p83 = por %p81, %p82
      %p84 = scmp.ne.s32.totalorder %s76, %s79
      %p85 = scmp.eq.s32.totalorder %s24, 0
      %p86 = por %p84, %p85
      %p87 = scmp.ne.s32.totalorder %s76, %s79
      %p88 = scmp.eq.s32.totalorder %s29, 1
      %p89 = por %p87, %p88
      %p90 = scmp.ne.s32.totalorder %s79, %s80
      %p91 = scmp.eq.s32.totalorder %s29, 0
      %p92 = por %p90, %p91
      %p93 = scmp.ne.s32.totalorder %s79, %s80
      %p94 = scmp.eq.s32.totalorder %s30, 1
      %p95 = por %p93, %p94
      %p97 = scmp.ne.s32.totalorder %s80, %s96
      %p98 = scmp.eq.s32.totalorder %s30, 0
      %p99 = por %p97, %p98
      %s101 = sadd.s32 %s100, 1
      %p104 = scmp.eq.s32.totalorder %s24, 1
      %p105 = scmp.ne.s32.totalorder %s100, %s102
      %p106 = scmp.eq.s32.totalorder %s24, 0
      %p107 = por %p105, %p106
      %p108 = scmp.ne.s32.totalorder %s100, %s102
      %p109 = scmp.eq.s32.totalorder %s29, 1
      %p110 = por %p108, %p109
      %p111 = scmp.ne.s32.totalorder %s102, %s103
      %p112 = scmp.eq.s32.totalorder %s29, 0
      %p113 = por %p111, %p112
      %p114 = scmp.ne.s32.totalorder %s102, %s103
      %p115 = scmp.eq.s32.totalorder %s30, 1
      %p116 = por %p114, %p115
      %p118 = scmp.ne.s32.totalorder %s103, %s117
      %p119 = scmp.eq.s32.totalorder %s30, 0
      %p120 = por %p118, %p119
      %s122 = sadd.s32 %s121, 1
      %p125 = scmp.eq.s32.totalorder %s24, 1
      %p126 = scmp.ne.s32.totalorder %s121, %s123
      %p127 = scmp.eq.s32.totalorder %s24, 0
      %p128 = por %p126, %p127
      %p129 = scmp.ne.s32.totalorder %s121, %s123
      %p130 = scmp.eq.s32.totalorder %s29, 1
      %p131 = por %p129, %p130
      %p132 = scmp.ne.s32.totalorder %s123, %s124
      %p133 = scmp.eq.s32.totalorder %s29, 0
      %p134 = por %p132, %p133
      %p135 = scmp.ne.s32.totalorder %s123, %s124
      %p136 = scmp.eq.s32.totalorder %s30, 1
      %p137 = por %p135, %p136
      %p139 = scmp.ne.s32.totalorder %s124, %s138
      %p140 = scmp.eq.s32.totalorder %s30, 0
      %p141 = por %p139, %p140
      %s143 = sadd.s32 %s142, 1
      %p146 = scmp.eq.s32.totalorder %s24, 1
      %p147 = scmp.ne.s32.totalorder %s142, %s144
      %p148 = scmp.eq.s32.totalorder %s24, 0
      %p149 = por %p147, %p148
      %p150 = scmp.ne.s32.totalorder %s142, %s144
      %p151 = scmp.eq.s32.totalorder %s29, 1
      %p152 = por %p150, %p151
      %p153 = scmp.ne.s32.totalorder %s144, %s145
      %p154 = scmp.eq.s32.totalorder %s29, 0
      %p155 = por %p153, %p154
      %p156 = scmp.ne.s32.totalorder %s144, %s145
      %p157 = scmp.eq.s32.totalorder %s30, 1
      %p158 = por %p156, %p157
      %p160 = scmp.ne.s32.totalorder %s145, %s159
      %p161 = scmp.eq.s32.totalorder %s30, 0
      %p162 = por %p160, %p161
      %s164 = sadd.s32 %s163, 1
      %p167 = scmp.eq.s32.totalorder %s24, 1
      %p168 = scmp.ne.s32.totalorder %s163, %s165
      %p169 = scmp.eq.s32.totalorder %s24, 0
      %p170 = por %p168, %p169
      %p171 = scmp.ne.s32.totalorder %s163, %s165
      %p172 = scmp.eq.s32.totalorder %s29, 1
      %p173 = por %p171, %p172
      %p174 = scmp.ne.s32.totalorder %s165, %s166
      %p175 = scmp.eq.s32.totalorder %s29, 0
      %p176 = por %p174, %p175
      %p177 = scmp.ne.s32.totalorder %s165, %s166
      %p178 = scmp.eq.s32.totalorder %s30, 1
      %p179 = por %p177, %p178
      %p181 = scmp.ne.s32.totalorder %s166, %s180
      %p182 = scmp.eq.s32.totalorder %s30, 0
      %p183 = por %p181, %p182
      %s185 = sadd.s32 %s184, 1
      %p188 = scmp.eq.s32.totalorder %s24, 1
      %p189 = scmp.ne.s32.totalorder %s184, %s186
      %p190 = scmp.eq.s32.totalorder %s24, 0
      %p191 = por %p189, %p190
      %p192 = scmp.ne.s32.totalorder %s184, %s186
      %p193 = scmp.eq.s32.totalorder %s29, 1
      %p194 = por %p192, %p193
      %p195 = scmp.ne.s32.totalorder %s186, %s187
      %p196 = scmp.eq.s32.totalorder %s29, 0
      %p197 = por %p195, %p196
      %p198 = scmp.ne.s32.totalorder %s186, %s187
      %p199 = scmp.eq.s32.totalorder %s30, 1
      %p200 = por %p198, %p199
      %p202 = scmp.ne.s32.totalorder %s187, %s201
      %p203 = scmp.eq.s32.totalorder %s30, 0
      %p204 = por %p202, %p203
      %s206 = sadd.s32 %s205, 1
      %p209 = scmp.eq.s32.totalorder %s24, 1
      %p210 = scmp.ne.s32.totalorder %s205, %s207
      %p211 = scmp.eq.s32.totalorder %s24, 0
      %p212 = por %p210, %p211
      %p213 = scmp.ne.s32.totalorder %s205, %s207
      %p214 = scmp.eq.s32.totalorder %s29, 1
      %p215 = por %p213, %p214
      %p216 = scmp.ne.s32.totalorder %s207, %s208
      %p217 = scmp.eq.s32.totalorder %s29, 0
      %p218 = por %p216, %p217
      %p219 = scmp.ne.s32.totalorder %s207, %s208
      %p220 = scmp.eq.s32.totalorder %s30, 1
      %p221 = por %p219, %p220
      %p223 = scmp.ne.s32.totalorder %s208, %s222
      %p224 = scmp.eq.s32.totalorder %s30, 0
      %p225 = por %p223, %p224
      %s227 = sadd.s32 %s226, 1
      %p230 = scmp.eq.s32.totalorder %s24, 1
      %p231 = scmp.ne.s32.totalorder %s226, %s228
      %p232 = scmp.eq.s32.totalorder %s24, 0
      %p233 = por %p231, %p232
      %p234 = scmp.ne.s32.totalorder %s226, %s228
      %p235 = scmp.eq.s32.totalorder %s29, 1
      %p236 = por %p234, %p235
      %p237 = scmp.ne.s32.totalorder %s228, %s229
      %p238 = scmp.eq.s32.totalorder %s29, 0
      %p239 = por %p237, %p238
      %p240 = scmp.ne.s32.totalorder %s228, %s229
      %p241 = scmp.eq.s32.totalorder %s30, 1
      %p242 = por %p240, %p241
      %p244 = scmp.ne.s32.totalorder %s229, %s243
      %p245 = scmp.eq.s32.totalorder %s30, 0
      %p246 = por %p244, %p245
      %s247 = ssub.s32 %s31, %s43
      %s248 = ssub.s32 %s32, %s39
      %s249 = sor.u32 %s247, %s248
      %p250 = scmp.eq.s32.totalorder %s249, 0
      %s252 = sadd.s32 %s251, 1
      %s253 = scalar_select %p250, %s251, %s252
      %p256 = pneg %p250
      %p257 = scmp.eq.s32.totalorder %s24, 1
      %p258 = por %p256, %p257
      %p259 = scmp.ne.s32.totalorder %s251, %s254
      %p260 = scmp.eq.s32.totalorder %s24, 0
      %p261 = por %p259, %p260
      %p262 = scmp.ne.s32.totalorder %s251, %s254
      %p263 = scmp.eq.s32.totalorder %s29, 1
      %p264 = por %p262, %p263
      %p265 = scmp.ne.s32.totalorder %s254, %s255
      %p266 = scmp.eq.s32.totalorder %s29, 0
      %p267 = por %p265, %p266
      %p268 = scmp.ne.s32.totalorder %s254, %s255
      %p269 = scmp.eq.s32.totalorder %s30, 1
      %p270 = por %p268, %p269
      %p272 = scmp.ne.s32.totalorder %s255, %s271
      %p273 = scmp.eq.s32.totalorder %s30, 0
      %p274 = por %p272, %p273
      %s275 = ssub.s32 %s31, %s43
      %p276 = scmp.eq.s32.totalorder %s275, 0
      %s278 = sadd.s32 %s277, 1
      %s279 = scalar_select %p276, %s277, %s278
      %p282 = pneg %p276
      %p283 = scmp.eq.s32.totalorder %s24, 1
      %p284 = por %p282, %p283
      %p285 = scmp.ne.s32.totalorder %s277, %s280
      %p286 = scmp.eq.s32.totalorder %s24, 0
      %p287 = por %p285, %p286
      %p288 = scmp.ne.s32.totalorder %s277, %s280
      %p289 = scmp.eq.s32.totalorder %s29, 1
      %p290 = por %p288, %p289
      %p291 = scmp.ne.s32.totalorder %s280, %s281
      %p292 = scmp.eq.s32.totalorder %s29, 0
      %p293 = por %p291, %p292
      %p294 = scmp.ne.s32.totalorder %s280, %s281
      %p295 = scmp.eq.s32.totalorder %s30, 1
      %p296 = por %p294, %p295
      %p298 = scmp.ne.s32.totalorder %s281, %s297
      %p299 = scmp.eq.s32.totalorder %s30, 0
      %p300 = por %p298, %p299
      %s301 = ssub.s32 %s31, %s43
      %p302 = scmp.eq.s32.totalorder %s301, 0
      %s304 = sadd.s32 %s303, 1
      %s305 = scalar_select %p302, %s303, %s304
      %p308 = pneg %p302
      %p309 = scmp.eq.s32.totalorder %s24, 1
      %p310 = por %p308, %p309
      %p311 = scmp.ne.s32.totalorder %s303, %s306
      %p312 = scmp.eq.s32.totalorder %s24, 0
      %p313 = por %p311, %p312
      %p314 = scmp.ne.s32.totalorder %s303, %s306
      %p315 = scmp.eq.s32.totalorder %s29, 1
      %p316 = por %p314, %p315
      %p317 = scmp.ne.s32.totalorder %s306, %s307
      %p318 = scmp.eq.s32.totalorder %s29, 0
      %p319 = por %p317, %p318
      %p320 = scmp.ne.s32.totalorder %s306, %s307
      %p321 = scmp.eq.s32.totalorder %s30, 1
      %p322 = por %p320, %p321
      %p324 = scmp.ne.s32.totalorder %s307, %s323
      %p325 = scmp.eq.s32.totalorder %s30, 0
      %p326 = por %p324, %p325
      %p327 = scmp.le.s32.totalorder 1, %s24
      %p328 = scmp.lt.s32.totalorder %s24, 3
      %p329 = pnand %p327, %p328
      %p330 = pneg %p329
      // Predicated region
      $region9: #{tpu_custom_call.1} parent=5 // pred_check
        _
      $region10: #{tpu_custom_call.1} parent=5 // pred_check_branch
        %332 = sbr.rel (%p329) target = $region12
      $region11: #{tpu_custom_call.1} parent=5 // pred_region
        %s333 = ssub.s32 %s24, 1
        // Predicated region
        $region13: #{tpu_custom_call.1} parent=11 // pred_check
          %p334 = pneg %p113
        $region14: #{tpu_custom_call.1} parent=11 // pred_check_branch
          %336 = sbr.rel (%p334) target = $region16
        $region15: #{tpu_custom_call.1} parent=11 // pred_region
          %s338 = ssub.s32 512, 512
          %339 = vsyncadd [#allocation9], %s338
          %s340 = sshll.u32 [#allocation8], 4
          %s341 = int_to_ptr.vmem [resolvable:$true] %s340
          %346 = dma.hbm_to_vmem [thread:$0]  %s2, 512, %s341, [#allocation9], 256, 256, 16
        $region16: #{tpu_custom_call.1} parent=11 // pred_fallthru
          _
        // Predicated region
        $region17: #{tpu_custom_call.1} parent=11 // pred_check
          %p347 = pneg %p134
        $region18: #{tpu_custom_call.1} parent=11 // pred_check_branch
          %349 = sbr.rel (%p347) target = $region20
        $region19: #{tpu_custom_call.1} parent=11 // pred_region
          %s351 = ssub.s32 512, 512
          %352 = vsyncadd [#allocation9], %s351
          %s353 = sshll.u32 [#allocation10], 4
          %s354 = int_to_ptr.vmem [resolvable:$true] %s353
          %359 = dma.hbm_to_vmem [thread:$0]  %s3, 512, %s354, [#allocation9], 256, 256, 16
        $region20: #{tpu_custom_call.1} parent=11 // pred_fallthru
          _
        // Predicated region
        $region21: #{tpu_custom_call.1} parent=11 // pred_check
          %p360 = pneg %p155
        $region22: #{tpu_custom_call.1} parent=11 // pred_check_branch
          %362 = sbr.rel (%p360) target = $region24
        $region23: #{tpu_custom_call.1} parent=11 // pred_region
          _
        $region24: #{tpu_custom_call.1} parent=11 // pred_fallthru
          _
        // Predicated region
        $region25: #{tpu_custom_call.1} parent=11 // pred_check
          %p363 = pneg %p176
        $region26: #{tpu_custom_call.1} parent=11 // pred_check_branch
          %365 = sbr.rel (%p363) target = $region28
        $region27: #{tpu_custom_call.1} parent=11 // pred_region
          _
        $region28: #{tpu_custom_call.1} parent=11 // pred_fallthru
          _
        // Predicated region
        $region29: #{tpu_custom_call.1} parent=11 // pred_check
          %p366 = pneg %p197
        $region30: #{tpu_custom_call.1} parent=11 // pred_check_branch
          %368 = sbr.rel (%p366) target = $region32
        $region31: #{tpu_custom_call.1} parent=11 // pred_region
          _
        $region32: #{tpu_custom_call.1} parent=11 // pred_fallthru
          _
        // Predicated region
        $region33: #{tpu_custom_call.1} parent=11 // pred_check
          %p369 = pneg %p218
        $region34: #{tpu_custom_call.1} parent=11 // pred_check_branch
          %371 = sbr.rel (%p369) target = $region36
        $region35: #{tpu_custom_call.1} parent=11 // pred_region
          _
        $region36: #{tpu_custom_call.1} parent=11 // pred_fallthru
          _
        // Predicated region
        $region37: #{tpu_custom_call.1} parent=11 // pred_check
          %p372 = pneg %p239
        $region38: #{tpu_custom_call.1} parent=11 // pred_check_branch
          %374 = sbr.rel (%p372) target = $region40
        $region39: #{tpu_custom_call.1} parent=11 // pred_region
          _
        $region40: #{tpu_custom_call.1} parent=11 // pred_fallthru
          _
      $region12: #{tpu_custom_call.1} parent=5 // pred_fallthru
        _
      %p375 = scmp.lt.s32.totalorder %s24, 2
      // Predicated region
      $region41: #{tpu_custom_call.1} parent=5 // pred_check
        %p376 = pneg %p375
      $region42: #{tpu_custom_call.1} parent=5 // pred_check_branch
        %378 = sbr.rel (%p376) target = $region44
      $region43: #{tpu_custom_call.1} parent=5 // pred_region
        // Predicated region
        $region45: #{tpu_custom_call.1} parent=43 // pred_check
          %p379 = pneg %p58
        $region46: #{tpu_custom_call.1} parent=43 // pred_check_branch
          %381 = sbr.rel (%p379) target = $region48
        $region47: #{tpu_custom_call.1} parent=43 // pred_region
          %s382 = sand.u32 %s48, 1
          %s383 = scalar_lea.sflag [#allocation7], %s382
          %s384 = sand.u32 %s48, 1
          %s385 = smul.addr %s384, 16
          %s386 = scalar_lea.vmem [#allocation6], %s385
          %s387 = smul.u32 2, %s32
          %s389 = ssub.s32 256, 256
          %390 = vsyncadd %s383, %s389
          %s391 = smul.addr %s31, 2
          %s392 = sadd.s32 %s387, %s391
          %s393 = smul.addr %s392, 128
          %s394 = scalar_lea.hbm %s0, %s393
          %s396 = sshll.u32 %s386, 4
          %s397 = int_to_ptr.vmem [resolvable:$true] %s396
          %399 = dma.hbm_to_vmem [thread:$0]  %s394, 256, %s397, %s383
        $region48: #{tpu_custom_call.1} parent=43 // pred_fallthru
          _
        // Predicated region
        $region49: #{tpu_custom_call.1} parent=43 // pred_check
          %p400 = pneg %p86
        $region50: #{tpu_custom_call.1} parent=43 // pred_check_branch
          %402 = sbr.rel (%p400) target = $region52
        $region51: #{tpu_custom_call.1} parent=43 // pred_region
          %s403 = smul.u32 2, %s32
          %p404 = scmp.lt.s32.totalorder %s31, 1
          %s405 = scalar_select %p404, %s31, 1
          %p406 = scmp.lt.s32.totalorder %s403, 1
          %s407 = scalar_select %p406, %s403, 1
          %s408 = smul.addr %s405, 2
          %s409 = sadd.s32 %s407, %s408
          %s410 = smul.addr %s409, 4
          %s411 = scalar_lea.vmem %s1, %s410
          %s412 = smul.u32 2, %s32
        $region52: #{tpu_custom_call.1} parent=43 // pred_fallthru
          _
      $region44: #{tpu_custom_call.1} parent=5 // pred_fallthru
        _
      %p413 = scmp.le.s32.totalorder 1, %s24
      %p414 = scmp.lt.s32.totalorder %s24, 3
      %p415 = pnand %p413, %p414
      %p416 = pneg %p415
      // Predicated region
      $region53: #{tpu_custom_call.1} parent=5 // pred_check
        _
      $region54: #{tpu_custom_call.1} parent=5 // pred_check_branch
        %418 = sbr.rel (%p415) target = $region56
      $region55: #{tpu_custom_call.1} parent=5 // pred_region
        %s419 = ssub.s32 %s24, 1
        %s420 = sand.u32 %s51, 1
        %s421 = scalar_lea.sflag [#allocation7], %s420
        %s422 = sand.u32 %s51, 1
        %s423 = smul.addr %s422, 16
        %s424 = scalar_lea.vmem [#allocation6], %s423
        // Predicated region
        $region57: #{tpu_custom_call.1} parent=55 // pred_check
          %p425 = pneg %p64
        $region58: #{tpu_custom_call.1} parent=55 // pred_check_branch
          %427 = sbr.rel (%p425) target = $region60
        $region59: #{tpu_custom_call.1} parent=55 // pred_region
          %428 = dma.done %s421, 256
        $region60: #{tpu_custom_call.1} parent=55 // pred_fallthru
          _
        // Predicated region
        $region61: #{tpu_custom_call.1} parent=55 // pred_check
          %p429 = pneg %p113
        $region62: #{tpu_custom_call.1} parent=55 // pred_check_branch
          %431 = sbr.rel (%p429) target = $region64
        $region63: #{tpu_custom_call.1} parent=55 // pred_region
          %432 = dma.done [#allocation9], 512
        $region64: #{tpu_custom_call.1} parent=55 // pred_fallthru
          _
        // Predicated region
        $region65: #{tpu_custom_call.1} parent=55 // pred_check
          %p433 = pneg %p134
        $region66: #{tpu_custom_call.1} parent=55 // pred_check_branch
          %435 = sbr.rel (%p433) target = $region68
        $region67: #{tpu_custom_call.1} parent=55 // pred_region
          %436 = dma.done [#allocation9], 512
        $region68: #{tpu_custom_call.1} parent=55 // pred_fallthru
          _
        %s437 = sand.u32 %s51, 1
        %s438 = scalar_lea.sflag [#allocation7], %s437
        %s439 = sand.u32 %s51, 1
        %s440 = smul.addr %s439, 16
        %s441 = scalar_lea.vmem [#allocation6], %s440
        %p442 = pneg %p64
        %p443 = pneg %p61
        %s444 = smul.u32 2, %s34
        %p445 = scmp.lt.s32.totalorder %s33, 1
        %s446 = scalar_select %p445, %s33, 1
        %p447 = scmp.lt.s32.totalorder %s444, 1
        %s448 = scalar_select %p447, %s444, 1
        %s449 = smul.addr %s446, 2
        %s450 = sadd.s32 %s448, %s449
        %s451 = smul.addr %s450, 4
        %s452 = scalar_lea.vmem %s1, %s451
        %p453 = pneg %p92
        %p454 = pneg %p89
        %p455 = pneg %p113
        %p456 = pneg %p110
        %p457 = pneg %p134
        %p458 = pneg %p131
        %p459 = pneg %p155
        %p460 = pneg %p152
        %p461 = pneg %p176
        %p462 = pneg %p173
        %p463 = pneg %p197
        %p464 = pneg %p194
        %p465 = pneg %p218
        %p466 = pneg %p215
        %p467 = pneg %p239
        %p468 = pneg %p236
        %p469 = pneg %p267
        %p470 = pneg %p264
        %s471 = smul.u32 2, %s34
        %p472 = scmp.lt.s32.totalorder %s33, 1
        %s473 = scalar_select %p472, %s33, 1
        %p474 = scmp.lt.s32.totalorder %s471, 1
        %s475 = scalar_select %p474, %s471, 1
        %s476 = smul.addr %s473, 2
        %s477 = sadd.s32 %s475, %s476
        %s478 = smul.addr %s477, 8
        %s479 = scalar_lea.vmem %s9, %s478
        %p480 = pneg %p293
        %p481 = pneg %p290
        %p482 = scmp.lt.s32.totalorder %s33, 1
        %s483 = scalar_select %p482, %s33, 1
        %s484 = smul.addr %s483, 2
        %s485 = smul.addr %s484, 8
        %s486 = scalar_lea.vmem %s10, %s485
        %p487 = pneg %p319
        %p488 = pneg %p316
        %p489 = scmp.lt.s32.totalorder %s33, 1
        %s490 = scalar_select %p489, %s33, 1
        %s491 = smul.addr %s490, 8
        %s492 = scalar_lea.vmem %s11, %s491
        %s493 = smul.u32 2, %s34
        %s494 = smul.u32 2, %s34
        %p495 = scmp.lt.s32.totalorder %s33, 1
        %s496 = scalar_select %p495, %s33, 1
        %p497 = scmp.lt.s32.totalorder %s494, 1
        %s498 = scalar_select %p497, %s494, 1
        %s499 = smul.addr %s496, 2
        %s500 = sadd.s32 %s498, %s499
        %s501 = smul.addr %s500, 4
        %s502 = scalar_lea.vmem %s1, %s501
        %s503 = smul.u32 2, %s34
        %s504 = smul.u32 2, %s34
        %p505 = scmp.lt.s32.totalorder %s33, 1
        %s506 = scalar_select %p505, %s33, 1
        %p507 = scmp.lt.s32.totalorder %s504, 1
        %s508 = scalar_select %p507, %s504, 1
        %s509 = smul.addr %s506, 2
        %s510 = sadd.s32 %s508, %s509
        %s511 = smul.addr %s510, 8
        %s512 = scalar_lea.vmem %s9, %s511
        %s513 = smul.u32 2, %s34
        %p514 = scmp.lt.s32.totalorder %s33, 1
        %s515 = scalar_select %p514, %s33, 1
        %s516 = smul.addr %s515, 2
        %s517 = smul.addr %s516, 8
        %s518 = scalar_lea.vmem %s10, %s517
        %p519 = scmp.lt.s32.totalorder %s33, 1
        %s520 = scalar_select %p519, %s33, 1
        %s521 = smul.addr %s520, 8
        %s522 = scalar_lea.vmem %s11, %s521
        %p523 = scmp.eq.s32.totalorder %s34, 0
        // Predicated region
        $region69: #{tpu_custom_call.1} parent=55 // pred_check
          %p524 = pneg %p523
        $region70: #{tpu_custom_call.1} parent=55 // pred_check_branch
          %526 = sbr.rel (%p524) target = $region72
        $region71: #{tpu_custom_call.1} parent=55 // pred_region
          %vm527 = vcmask 7168
          %528 = vst.msk [vmem:[#allocation2] sm:$0xff] %vm527, 0.0
          %529 = vst.msk [vmem:[#allocation2 + $0x8] sm:$0xff] %vm527, 0.0
          %530 = vst.msk [vmem:[#allocation3] sm:$0xff] %vm527, 0.0
          %vm531 = vcmask 3072
          %532 = vst.msk [vmem:[#allocation4] sm:$0xf] %vm531, 0.0
        $region72: #{tpu_custom_call.1} parent=55 // pred_fallthru
          _
        %v533 = vld [vmem:[%s424] sm:$0xff]
        %v534 = vld [vmem:[%s424 + $0x8] sm:$0xff]
        %v535 = vld [vmem:[%s502] sm:$0xff]
        %v536 = vld [vmem:[%s4] sm:$0x1]
        %vm537 = vcmask 64512
        %v539 = vsel %vm537, %v536, 0
        %541 = vmatprep.subr.mxu0 0.0
        %542 = vmatpush1.msra.mxu0 0.0
        %543 = vmatprep.subr.mxu0 0.0
        %544 = vmatpush1.msra.mxu0 0.0
        %545 = vmatprep.subr.mxu0 0.0
        %546 = vmatpush1.msra.mxu0 0.0
        %547 = vmatprep.subr.mxu0 0.0
        %548 = vmatpush1.msra.mxu0 0.0
        %549 = vmatprep.subr.mxu0 0.0
        %550 = vmatpush1.msra.mxu0 0.0
        %551 = vmatprep.subr.mxu0 0.0
        %552 = vmatpush1.msra.mxu0 0.0
        %553 = vmatprep.subr.mxu0 0.0
        %554 = vmatpush1.msra.mxu0 0.0
        %555 = vmatprep.subr.mxu0 0.0
        %556 = vmatpush1.msra.mxu0 0.0
        %557 = vmatprep.subr.mxu0 0.0
        %558 = vmatpush1.msra.mxu0 0.0
        %559 = vmatprep.subr.mxu0 0.0
        %560 = vmatpush1.msra.mxu0 0.0
        %561 = vmatprep.subr.mxu0 0.0
        %562 = vmatpush1.msra.mxu0 0.0
        %563 = vmatprep.subr.mxu0 0.0
        %564 = vmatpush1.msra.mxu0 0.0
        %565 = vmatprep.subr.mxu0 0.0
        %566 = vmatpush1.msra.mxu0 0.0
        %567 = vmatprep.subr.mxu0 0.0
        %568 = vmatpush1.msra.mxu0 0.0
        %569 = vmatprep.subr.mxu0 0.0
        %570 = vmatpush1.msra.mxu0 0.0
        %571 = vmatprep.subr.mxu0 %v534
        %572 = vmatpush1.msra.mxu0 %v533
        %573 = vmatprep.subr.mxu0 0.0
        %574 = vmatpush2.msra.mxu0 0.0
        %575 = vmatprep.subr.mxu0 0.0
        %576 = vmatpush2.msra.mxu0 0.0
        %577 = vmatprep.subr.mxu0 0.0
        %578 = vmatpush2.msra.mxu0 0.0
        %579 = vmatprep.subr.mxu0 0.0
        %580 = vmatpush2.msra.mxu0 0.0
        %581 = vmatprep.subr.mxu0 0.0
        %582 = vmatpush2.msra.mxu0 0.0
        %583 = vmatprep.subr.mxu0 0.0
        %584 = vmatpush2.msra.mxu0 0.0
        %585 = vmatprep.subr.mxu0 0.0
        %586 = vmatpush2.msra.mxu0 0.0
        %587 = vmatprep.subr.mxu0 0.0
        %588 = vmatpush2.msra.mxu0 0.0
        %589 = vmatprep.subr.mxu0 0.0
        %590 = vmatpush2.msra.mxu0 0.0
        %591 = vmatprep.subr.mxu0 0.0
        %592 = vmatpush2.msra.mxu0 0.0
        %593 = vmatprep.subr.mxu0 0.0
        %594 = vmatpush2.msra.mxu0 0.0
        %595 = vmatprep.subr.mxu0 0.0
        %596 = vmatpush2.msra.mxu0 0.0
        %597 = vmatprep.subr.mxu0 0.0
        %598 = vmatpush2.msra.mxu0 0.0
        %599 = vmatprep.subr.mxu0 0.0
        %600 = vmatpush2.msra.mxu0 0.0
        %601 = vmatprep.subr.mxu0 0.0
        %602 = vmatpush2.msra.mxu0 0.0
        %603 = vmatprep.subr.mxu0 0.0
        %604 = vmatpush2.msra.mxu0 0.0
        %605 = vmatprep.mubr.f32.mxu0 0.0
        %606 = vmatmul.mubr.f32.gmra.mxu0 %v539
        %v607 = vpop.f32.mrf.mxu0
        %v608 = vadd.f32 0.0, %v607
        %v609 = vpop.f32.mrf.mxu0
        %v610 = vadd.f32 0.0, %v609
        %611 = vdwg.mxu0
        %v612 = vld [vmem:[#allocation8] sm:$0xff]
        %v613 = vld [vmem:[#allocation8 + $0x8] sm:$0xff]
        %v614 = vld [vmem:[#allocation8 + $0x10] sm:$0xff]
        %v615 = vld [vmem:[#allocation8 + $0x18] sm:$0xff]
        %v616 = vlaneseq
        %v617 = vshrl.u32 %v616, 7
        %v618 = vsub.s32 0, %v617
        %v619 = vrot.slane %v608, %v618
        %v620 = vlaneseq
        %v621 = vshrl.u32 %v620, 7
        %v622 = vsub.s32 0, %v621
        %v623 = vrot.slane %v610, %v622
        %v624 = vmul.f32 %v612, %v619
        %v625 = vmul.f32 %v613, %v623
        %v626 = vmul.f32 %v614, %v619
        %v627 = vmul.f32 %v615, %v623
        %v628 = vadd.f32 %v624, %v625
        %629 = vadd.xlane.f32.xlu0 %v628
        %v630 = vpop.xlane.xlu0 %629
        %v631 = vadd.f32 %v626, %v627
        %632 = vadd.xlane.f32.xlu0 %v631
        %v633 = vpop.xlane.xlu0 %632
        %v634 = vmul.f32 %v630, 0.0625
        %v635 = vmul.f32 %v633, 0.0625
        %v636 = vld [vmem:[#allocation5] sm:$0x1]
        %v638 = vlaneseq
        %v639 = vshrl.u32 %v638, 7
        %v640 = vsub.s32 0, %v639
        %v641 = vrot.slane %v636, %v640
        %v643 = vadd.f32 %v634, %v641
        %v644 = vadd.f32 %v635, %v641
        %v645 = vxor.u32 %v643, 2147483648
        %v646 = vxor.u32 %v644, 2147483648
        %v647 = vmul.f32 %v645, 1.442695
        %v648 = vpow.pop %v647
        %v649 = vmul.f32 %v646, 1.442695
        %v650 = vpow.pop %v649
        %v651 = vadd.f32 %v648, 1.0
        %v652 = vadd.f32 %v650, 1.0
        %v653 = vrcp.pop %v651
        %v654 = vmul.f32 1.0, %v653
        %v655 = vrcp.pop %v652
        %v656 = vmul.f32 1.0, %v655
        %vm657 = vcmask 7168
        %658 = vst.msk [vmem:[%s512] sm:$0xff] %vm657, %v654
        %659 = vst.msk [vmem:[%s512 + $0x8] sm:$0xff] %vm657, %v656
        %v660 = vld [vmem:[#allocation2] sm:$0xff]
        %v661 = vld [vmem:[#allocation2 + $0x8] sm:$0xff]
        %v662 = vld [vmem:[#allocation10] sm:$0xff]
        %v663 = vld [vmem:[#allocation10 + $0x8] sm:$0xff]
        %v664 = vld [vmem:[#allocation10 + $0x10] sm:$0xff]
        %v665 = vld [vmem:[#allocation10 + $0x18] sm:$0xff]
        %v666 = vmul.f32 %v662, %v619
        %v667 = vmul.f32 %v663, %v623
        %v668 = vmul.f32 %v664, %v619
        %v669 = vmul.f32 %v665, %v623
        %v670 = vadd.f32 %v666, %v667
        %671 = vadd.xlane.f32.xlu0 %v670
        %v672 = vpop.xlane.xlu0 %671
        %v673 = vadd.f32 %v668, %v669
        %674 = vadd.xlane.f32.xlu0 %v673
        %v675 = vpop.xlane.xlu0 %674
        %v676 = vadd.f32 %v660, %v672
        %v677 = vadd.f32 %v661, %v675
        %678 = vst.msk [vmem:[#allocation2] sm:$0xff] %vm657, %v676
        %679 = vst.msk [vmem:[#allocation2 + $0x8] sm:$0xff] %vm657, %v677
        %v680 = vld [vmem:[#allocation3] sm:$0xff]
        %v681 = vadd.f32 %v533, %v534
        %682 = vadd.xlane.f32.xlu0 %v681
        %v683 = vpop.xlane.xlu0 %682
        %v684 = vadd.f32 %v680, %v683
        %685 = vst.msk [vmem:[#allocation3] sm:$0xff] %vm657, %v684
        %v686 = vld [vmem:[#allocation4] sm:$0xf]
        %v688 = vcombine.high %v535, %v535
        %vm690 = vcmask 1043456
        %v691 = vsel %vm690, %v535, 0.0
        %v692 = vsel %vm690, %v688, 0.0
        %v693 = vadd.f32 %v691, %v692
        %694 = vadd.xlane.f32.xlu0 %v693
        %v695 = vpop.xlane.xlu0 %694
        %v696 = vadd.f32 %v686, %v695
        %vm697 = vcmask 3072
        %698 = vst.msk [vmem:[#allocation4] sm:$0xf] %vm697, %v696
        // Predicated region
        $region73: #{tpu_custom_call.1} parent=55 // pred_check
          %p699 = pneg %p523
        $region74: #{tpu_custom_call.1} parent=55 // pred_check_branch
          %701 = sbr.rel (%p699) target = $region76
        $region75: #{tpu_custom_call.1} parent=55 // pred_region
          %v702 = vld [vmem:[#allocation2] sm:$0xff]
          %v703 = vld [vmem:[#allocation2 + $0x8] sm:$0xff]
          %v704 = vmul.f32 %v702, 0.0625
          %v705 = vmul.f32 %v703, 0.0625
          %v706 = vld [vmem:[#allocation5] sm:$0x1]
          %v708 = vlaneseq
          %v709 = vshrl.u32 %v708, 7
          %v710 = vsub.s32 0, %v709
          %v711 = vrot.slane %v706, %v710
          %v713 = vadd.f32 %v704, %v711
          %v714 = vadd.f32 %v705, %v711
          %v715 = vxor.u32 %v713, 2147483648
          %v716 = vxor.u32 %v714, 2147483648
          %v717 = vmul.f32 %v715, 1.442695
          %v718 = vpow.pop %v717
          %v719 = vmul.f32 %v716, 1.442695
          %v720 = vpow.pop %v719
          %v721 = vadd.f32 %v718, 1.0
          %v722 = vadd.f32 %v720, 1.0
          %v723 = vrcp.pop %v721
          %v724 = vmul.f32 1.0, %v723
          %v725 = vrcp.pop %v722
          %v726 = vmul.f32 1.0, %v725
          %727 = vst.msk [vmem:[%s518] sm:$0xff] %vm657, %v724
          %728 = vst.msk [vmem:[%s518 + $0x8] sm:$0xff] %vm657, %v726
          %v729 = vld [vmem:[#allocation3] sm:$0xff]
          %v730 = vmul.f32 %v729, 0.00390625
          %v731 = vld [vmem:[#allocation4] sm:$0xf]
          %v732 = vmul.f32 %v731, 0.00390625
          %v733 = vld [vmem:[%s6] sm:$0xff]
          %v734 = vld [vmem:[%s7] sm:$0xff]
          %vm735 = vcmask 31744
          %v737 = vsel %vm735, %v734, 0
          %v740 = vsel %vm690, %v732, 0
          %742 = vmatprep.subr.mxu0 0.0
          %743 = vmatpush1.msra.mxu0 0.0
          %744 = vmatprep.subr.mxu0 0.0
          %745 = vmatpush1.msra.mxu0 0.0
          %746 = vmatprep.subr.mxu0 0.0
          %747 = vmatpush1.msra.mxu0 0.0
          %748 = vmatprep.subr.mxu0 0.0
          %749 = vmatpush1.msra.mxu0 0.0
          %750 = vmatprep.subr.mxu0 0.0
          %751 = vmatpush1.msra.mxu0 0.0
          %752 = vmatprep.subr.mxu0 0.0
          %753 = vmatpush1.msra.mxu0 0.0
          %754 = vmatprep.subr.mxu0 0.0
          %755 = vmatpush1.msra.mxu0 0.0
          %756 = vmatprep.subr.mxu0 0.0
          %757 = vmatpush1.msra.mxu0 0.0
          %758 = vmatprep.subr.mxu0 0.0
          %759 = vmatpush1.msra.mxu0 0.0
          %760 = vmatprep.subr.mxu0 0.0
          %761 = vmatpush1.msra.mxu0 0.0
          %762 = vmatprep.subr.mxu0 0.0
          %763 = vmatpush1.msra.mxu0 0.0
          %764 = vmatprep.subr.mxu0 0.0
          %765 = vmatpush1.msra.mxu0 0.0
          %766 = vmatprep.subr.mxu0 0.0
          %767 = vmatpush1.msra.mxu0 0.0
          %768 = vmatprep.subr.mxu0 0.0
          %769 = vmatpush1.msra.mxu0 0.0
          %770 = vmatprep.subr.mxu0 0.0
          %771 = vmatpush1.msra.mxu0 0.0
          %772 = vmatprep.subr.mxu0 0.0
          %773 = vmatpush1.msra.mxu0 %v740
          %774 = vmatprep.subr.mxu0 0.0
          %775 = vmatpush2.msra.mxu0 0.0
          %776 = vmatprep.subr.mxu0 0.0
          %777 = vmatpush2.msra.mxu0 0.0
          %778 = vmatprep.subr.mxu0 0.0
          %779 = vmatpush2.msra.mxu0 0.0
          %780 = vmatprep.subr.mxu0 0.0
          %781 = vmatpush2.msra.mxu0 0.0
          %782 = vmatprep.subr.mxu0 0.0
          %783 = vmatpush2.msra.mxu0 0.0
          %784 = vmatprep.subr.mxu0 0.0
          %785 = vmatpush2.msra.mxu0 0.0
          %786 = vmatprep.subr.mxu0 0.0
          %787 = vmatpush2.msra.mxu0 0.0
          %788 = vmatprep.subr.mxu0 0.0
          %789 = vmatpush2.msra.mxu0 0.0
          %790 = vmatprep.subr.mxu0 0.0
          %791 = vmatpush2.msra.mxu0 0.0
          %792 = vmatprep.subr.mxu0 0.0
          %793 = vmatpush2.msra.mxu0 0.0
          %794 = vmatprep.subr.mxu0 0.0
          %795 = vmatpush2.msra.mxu0 0.0
          %796 = vmatprep.subr.mxu0 0.0
          %797 = vmatpush2.msra.mxu0 0.0
          %798 = vmatprep.subr.mxu0 0.0
          %799 = vmatpush2.msra.mxu0 0.0
          %800 = vmatprep.subr.mxu0 0.0
          %801 = vmatpush2.msra.mxu0 0.0
          %802 = vmatprep.subr.mxu0 0.0
          %803 = vmatpush2.msra.mxu0 0.0
          %804 = vmatprep.subr.mxu0 0.0
          %805 = vmatpush2.msra.mxu0 0.0
          %806 = vmatprep.mubr.f32.mxu0 0.0
          %807 = vmatmul.mubr.f32.gmra.mxu0 %v737
          %v808 = vpop.f32.mrf.mxu0
          %v809 = vadd.f32 0.0, %v808
          %v810 = vpop.f32.mrf.mxu0
          %811 = vdwg.mxu0
          %v813 = vsel %vm537, %v733, 0
          %815 = vmatprep.subr.mxu0 0.0
          %816 = vmatpush1.msra.mxu0 0.0
          %817 = vmatprep.subr.mxu0 0.0
          %818 = vmatpush1.msra.mxu0 0.0
          %819 = vmatprep.subr.mxu0 0.0
          %820 = vmatpush1.msra.mxu0 0.0
          %821 = vmatprep.subr.mxu0 0.0
          %822 = vmatpush1.msra.mxu0 0.0
          %823 = vmatprep.subr.mxu0 0.0
          %824 = vmatpush1.msra.mxu0 0.0
          %825 = vmatprep.subr.mxu0 0.0
          %826 = vmatpush1.msra.mxu0 0.0
          %827 = vmatprep.subr.mxu0 0.0
          %828 = vmatpush1.msra.mxu0 0.0
          %829 = vmatprep.subr.mxu0 0.0
          %830 = vmatpush1.msra.mxu0 0.0
          %831 = vmatprep.subr.mxu0 0.0
          %832 = vmatpush1.msra.mxu0 0.0
          %833 = vmatprep.subr.mxu0 0.0
          %834 = vmatpush1.msra.mxu0 0.0
          %835 = vmatprep.subr.mxu0 0.0
          %836 = vmatpush1.msra.mxu0 0.0
          %837 = vmatprep.subr.mxu0 0.0
          %838 = vmatpush1.msra.mxu0 0.0
          %839 = vmatprep.subr.mxu0 0.0
          %840 = vmatpush1.msra.mxu0 0.0
          %841 = vmatprep.subr.mxu0 0.0
          %842 = vmatpush1.msra.mxu0 0.0
          %843 = vmatprep.subr.mxu0 0.0
          %844 = vmatpush1.msra.mxu0 0.0
          %845 = vmatprep.subr.mxu0 0.0
          %846 = vmatpush1.msra.mxu0 %v730
          %847 = vmatprep.subr.mxu0 0.0
          %848 = vmatpush2.msra.mxu0 0.0
          %849 = vmatprep.subr.mxu0 0.0
          %850 = vmatpush2.msra.mxu0 0.0
          %851 = vmatprep.subr.mxu0 0.0
          %852 = vmatpush2.msra.mxu0 0.0
          %853 = vmatprep.subr.mxu0 0.0
          %854 = vmatpush2.msra.mxu0 0.0
          %855 = vmatprep.subr.mxu0 0.0
          %856 = vmatpush2.msra.mxu0 0.0
          %857 = vmatprep.subr.mxu0 0.0
          %858 = vmatpush2.msra.mxu0 0.0
          %859 = vmatprep.subr.mxu0 0.0
          %860 = vmatpush2.msra.mxu0 0.0
          %861 = vmatprep.subr.mxu0 0.0
          %862 = vmatpush2.msra.mxu0 0.0
          %863 = vmatprep.subr.mxu0 0.0
          %864 = vmatpush2.msra.mxu0 0.0
          %865 = vmatprep.subr.mxu0 0.0
          %866 = vmatpush2.msra.mxu0 0.0
          %867 = vmatprep.subr.mxu0 0.0
          %868 = vmatpush2.msra.mxu0 0.0
          %869 = vmatprep.subr.mxu0 0.0
          %870 = vmatpush2.msra.mxu0 0.0
          %871 = vmatprep.subr.mxu0 0.0
          %872 = vmatpush2.msra.mxu0 0.0
          %873 = vmatprep.subr.mxu0 0.0
          %874 = vmatpush2.msra.mxu0 0.0
          %875 = vmatprep.subr.mxu0 0.0
          %876 = vmatpush2.msra.mxu0 0.0
          %877 = vmatprep.subr.mxu0 0.0
          %878 = vmatpush2.msra.mxu0 0.0
          %879 = vmatprep.mubr.f32.mxu0 0.0
          %880 = vmatmul.mubr.f32.gmra.mxu0 %v813
          %v881 = vpop.f32.mrf.mxu0
          %v882 = vadd.f32 %v809, %v881
          %v883 = vpop.f32.mrf.mxu0
          %884 = vdwg.mxu0
          %v885 = vld [vmem:[%s8] sm:$0xff]
          %v886 = vadd.f32 %v882, %v885
          %v887 = vxor.u32 %v886, 2147483648
          %v888 = vmul.f32 %v887, 1.442695
          %v889 = vpow.pop %v888
          %v890 = vadd.f32 %v889, 1.0
          %v891 = vrcp.pop %v890
          %v892 = vmul.f32 1.0, %v891
          %893 = vst.msk [vmem:[%s522] sm:$0xff] %vm657, %v892
        $region76: #{tpu_custom_call.1} parent=55 // pred_fallthru
          _
        %s894 = smul.u32 2, %s34
        %p895 = scmp.lt.s32.totalorder %s33, 1
        %s896 = scalar_select %p895, %s33, 1
        %p897 = scmp.lt.s32.totalorder %s894, 1
        %s898 = scalar_select %p897, %s894, 1
        %s899 = smul.addr %s896, 2
        %s900 = sadd.s32 %s898, %s899
        %s901 = smul.addr %s900, 8
        %s902 = scalar_lea.vmem %s9, %s901
        %p903 = scmp.lt.s32.totalorder %s33, 1
        %s904 = scalar_select %p903, %s33, 1
        %s905 = smul.addr %s904, 2
        %s906 = smul.addr %s905, 8
        %s907 = scalar_lea.vmem %s10, %s906
        %p908 = scmp.lt.s32.totalorder %s33, 1
        %s909 = scalar_select %p908, %s33, 1
        %s910 = smul.addr %s909, 8
        %s911 = scalar_lea.vmem %s11, %s910
        // Predicated region
        $region77: #{tpu_custom_call.1} parent=55 // pred_check
          %p912 = pneg %p264
        $region78: #{tpu_custom_call.1} parent=55 // pred_check_branch
          %914 = sbr.rel (%p912) target = $region80
        $region79: #{tpu_custom_call.1} parent=55 // pred_region
          %s915 = smul.u32 2, %s34
        $region80: #{tpu_custom_call.1} parent=55 // pred_fallthru
          _
        // Predicated region
        $region81: #{tpu_custom_call.1} parent=55 // pred_check
          %p916 = pneg %p290
        $region82: #{tpu_custom_call.1} parent=55 // pred_check_branch
          %918 = sbr.rel (%p916) target = $region84
        $region83: #{tpu_custom_call.1} parent=55 // pred_region
          _
        $region84: #{tpu_custom_call.1} parent=55 // pred_fallthru
          _
        // Predicated region
        $region85: #{tpu_custom_call.1} parent=55 // pred_check
          %p919 = pneg %p316
        $region86: #{tpu_custom_call.1} parent=55 // pred_check_branch
          %921 = sbr.rel (%p919) target = $region88
        $region87: #{tpu_custom_call.1} parent=55 // pred_region
          _
        $region88: #{tpu_custom_call.1} parent=55 // pred_fallthru
          _
      $region56: #{tpu_custom_call.1} parent=5 // pred_fallthru
        _
      %p922 = scmp.le.s32.totalorder 2, %s24
      // Predicated region
      $region89: #{tpu_custom_call.1} parent=5 // pred_check
        %p923 = pneg %p922
      $region90: #{tpu_custom_call.1} parent=5 // pred_check_branch
        %925 = sbr.rel (%p923) target = $region92
      $region91: #{tpu_custom_call.1} parent=5 // pred_region
        %s926 = ssub.s32 %s24, 2
        // Predicated region
        $region93: #{tpu_custom_call.1} parent=91 // pred_check
          %p927 = pneg %p270
        $region94: #{tpu_custom_call.1} parent=91 // pred_check_branch
          %929 = sbr.rel (%p927) target = $region96
        $region95: #{tpu_custom_call.1} parent=91 // pred_region
          %s930 = smul.u32 2, %s36
          %p931 = scmp.lt.s32.totalorder %s35, 1
          %s932 = scalar_select %p931, %s35, 1
          %p933 = scmp.lt.s32.totalorder %s930, 1
          %s934 = scalar_select %p933, %s930, 1
          %s935 = smul.addr %s932, 2
          %s936 = sadd.s32 %s934, %s935
          %s937 = smul.addr %s936, 8
          %s938 = scalar_lea.vmem %s9, %s937
        $region96: #{tpu_custom_call.1} parent=91 // pred_fallthru
          _
        // Predicated region
        $region97: #{tpu_custom_call.1} parent=91 // pred_check
          %p939 = pneg %p296
        $region98: #{tpu_custom_call.1} parent=91 // pred_check_branch
          %941 = sbr.rel (%p939) target = $region100
        $region99: #{tpu_custom_call.1} parent=91 // pred_region
          %p942 = scmp.lt.s32.totalorder %s35, 1
          %s943 = scalar_select %p942, %s35, 1
          %s944 = smul.addr %s943, 2
          %s945 = smul.addr %s944, 8
          %s946 = scalar_lea.vmem %s10, %s945
        $region100: #{tpu_custom_call.1} parent=91 // pred_fallthru
          _
        // Predicated region
        $region101: #{tpu_custom_call.1} parent=91 // pred_check
          %p947 = pneg %p322
        $region102: #{tpu_custom_call.1} parent=91 // pred_check_branch
          %949 = sbr.rel (%p947) target = $region104
        $region103: #{tpu_custom_call.1} parent=91 // pred_region
          %p950 = scmp.lt.s32.totalorder %s35, 1
          %s951 = scalar_select %p950, %s35, 1
          %s952 = smul.addr %s951, 8
          %s953 = scalar_lea.vmem %s11, %s952
        $region104: #{tpu_custom_call.1} parent=91 // pred_fallthru
          _
      $region92: #{tpu_custom_call.1} parent=5 // pred_fallthru
        _
    $region6: #{tpu_custom_call.1} parent=1 // loop_footer
      %s28 = sadd.s32 1, %s24
    $region7: #{tpu_custom_call.1} parent=1 // loop_footer_branch
      %23 = sbr.rel target = $region3
    $region8: #{tpu_custom_call.1} parent=1 // loop_exit
      _
    %954 = vsyncpa [#allocation7], 1
    %s955 = scalar_lea.sflag [#allocation7], 1
    %956 = vsyncpa %s955, 1
    %957 = vsyncpa [#allocation9], 1

</llo_original>
